<compile_context>
chip_gen: v7x
topology: tpu7x:2x2x1
jax: 0.10.0
libtpu: 0.0.40
codegen_flags: <defaults>
</compile_context>

<pallas_src>
import functools
import math

import jax
import jax.numpy as jnp
from jax import lax
from jax.experimental import pallas as pl
from jax.experimental.pallas import tpu as pltpu


def _fused_sinkhorn(cost_pos, cost_neg, lam, n, niter, thresh):
    """Solve both Sinkhorn problems in one early-exiting while loop.

    Operates directly on E = exp(M(u, v)); mathematically identical to the log-domain
    updates of the PyTorch reference (including the +1e-6 inside the log-sum-exp and the
    post-update `break` check), just algebraically restructured so no full-matrix exp is
    needed inside the loop.
    """
    lam_f = jnp.float32(lam)
    inv_lam = jnp.float32(1.0 / lam)
    inv_n = jnp.float32(1.0 / n)
    log_marg = jnp.float32(-math.log(n))   # log(mu_i) = log(nu_j) = log(1/n)
    thresh_f = jnp.float32(thresh)
    eps = jnp.float32(1e-6)

    # E_0 = exp(M(0, 0)) = exp(-lam * C)  -- the only full-matrix exp per problem.
    ep0 = jnp.exp(-lam_f * cost_pos)
    en0 = jnp.exp(-lam_f * cost_neg)

    def step(E, done):
        # Row update: u_new = (1/lam)*(log(1/n) - log(rowsum + 1e-6)) + u
        #   => exp(M(u_new, v)) = E * exp(lam*(u_new - u)) = E * (1/n)/(rowsum + 1e-6)
        rs = jnp.sum(E, axis=1, keepdims=True)                 # (N, 1)
        lse_r = jnp.log(rs + eps)
        err = inv_lam * jnp.sum(jnp.abs(log_marg - lse_r))     # == sum |u_new - u|
        E1 = E * (inv_n / (rs + eps))
        # Column update: lse over M(u_new, v).t() rows == column sums of E1.
        cs = jnp.sum(E1, axis=0, keepdims=True)                # (1, N)
        E2 = E1 * (inv_n / (cs + eps))
        # Emulate the reference's per-problem `break`: once converged, freeze.
        E_out = done * E + (1.0 - done) * E2
        done_out = jnp.maximum(done, (err < thresh_f).astype(jnp.float32))
        return E_out, done_out

    def cond(carry):
        it, done_p, done_n, _, _ = carry
        return jnp.logical_and(it < niter, done_p + done_n < 1.5)

    def body(carry):
        it, done_p, done_n, ep, en = carry
        # Two independent problems in one body: their VPU/XLU/EUP ops interleave (ILP).
        ep, done_p = step(ep, done_p)
        en, done_n = step(en, done_n)
        return it + 1, done_p, done_n, ep, en

    init = (jnp.int32(0), jnp.float32(0.0), jnp.float32(0.0), ep0, en0)
    _, _, _, pi_pos, pi_neg = lax.while_loop(cond, body, init)
    return pi_pos, pi_neg


def opt_loss_kernel(emb_ref, tgt_col_ref, tgt_row_ref, out_ref,
                    *, m_lb, m_ub, scale, lam, niter, thresh):
    e = emb_ref[...].astype(jnp.float32)                       # (N, D)
    # F.normalize(embedding, dim=1)  (p=2, eps=1e-12)
    norm = jnp.sqrt(jnp.sum(e * e, axis=1, keepdims=True))
    e = e / jnp.maximum(norm, 1e-12)

    # dist = embedding @ embedding.T (contract feature dims -> no transpose op).
    # Kept in f32: a bf16 cast would speed up the MXU pass but can flip the
    # (dist > m_ub)/(dist < m_lb) threshold comparisons, and the matmul is negligible
    # next to the Sinkhorn loop.
    dist = lax.dot_general(e, e, (((1,), (1,)), ((), ())),
                           preferred_element_type=jnp.float32)  # (N, N)
    N = dist.shape[0]

    t_col = tgt_col_ref[...]                                    # (N, 1) int32
    t_row = tgt_row_ref[...]                                    # (1, N) int32
    is_pos = (t_col == t_row).astype(jnp.float32)
    is_neg = 1.0 - is_pos                                       # no second compare

    # TODO(synk): dist_pos / dist_neg are EMA module state (not part of the returned loss),
    # so the stateful running average is not carried across kernel calls here.

    # Cost matrices + min/max normalization (full-matrix divide -> scalar recip * mul).
    # (Same no-positives / no-negatives divide-by-zero hazard as the reference.)
    cost_pos = is_pos * ((dist > m_ub).astype(jnp.float32) + dist) + is_neg * 30.0
    cp_min = jnp.min(cost_pos)
    cp_inv = 1.0 / (jnp.max(cost_pos) - cp_min)
    cost_pos = (cost_pos - cp_min) * cp_inv

    cost_neg = is_neg * ((dist < m_lb).astype(jnp.float32) + 1.0 - dist) + is_pos * 30.0
    cn_min = jnp.min(cost_neg)
    cn_inv = 1.0 / (jnp.max(cost_neg) - cn_min)
    cost_neg = (cost_neg - cn_min) * cn_inv

    # Both Sinkhorn problems fused into one early-exiting loop.
    pi_pos, pi_neg = _fused_sinkhorn(cost_pos, cost_neg, lam, N, niter, thresh)

    # Edge matrices built AFTER the loop so they are not live across the iterations.
    edge_pos = is_pos * jnp.maximum(m_ub - dist, 0.0) + is_neg * (-1e7)
    edge_neg = is_neg * jnp.maximum(dist - m_lb, 0.0) + is_pos * (-1e7)

    loss = jnp.sum(pi_pos * edge_pos) + jnp.sum(pi_neg * edge_neg)
    out_ref[...] = jnp.broadcast_to(loss * scale, (1, 1))


def opt_loss(embedding, targets, *, m_lb=0.3, m_ub=0.7, scale=1.0,
             lam=100.0, niter=100, thresh=0.1):
    """Returns the same tuple shape as OPTLoss.forward: (loss*scale, 0, 0, 0, 0, 0)."""
    N, D = embedding.shape
    t_col = targets.reshape(N, 1).astype(jnp.int32)
    t_row = targets.reshape(1, N).astype(jnp.int32)

    kernel_fn = functools.partial(
        opt_loss_kernel,
        m_lb=float(m_lb), m_ub=float(m_ub), scale=float(scale),
        lam=float(lam), niter=int(niter), thresh=float(thresh))

    # Scoped-VMEM limit sized to the actual live set (a handful of NxN f32 buffers plus
    # temporaries and the embedding), with headroom, capped at v7x's 64 MiB physical VMEM.
    nxn_bytes = 4 * N * N
    vmem_limit = int(min(max(16 * nxn_bytes + 4 * N * D + (2 << 20), 16 << 20), 64 << 20))

    out = pl.pallas_call(
        kernel_fn,
        out_shape=jax.ShapeDtypeStruct((1, 1), jnp.float32),
        in_specs=[pl.BlockSpec(memory_space=pltpu.MemorySpace.VMEM)] * 3,
        out_specs=pl.BlockSpec(memory_space=pltpu.MemorySpace.VMEM),
        compiler_params=pltpu.CompilerParams(vmem_limit_bytes=vmem_limit),
    )(embedding.astype(jnp.float32), t_col, t_row)

    loss = out[0, 0]
    return (loss, 0.0, 0.0, 0.0, 0.0, 0.0)


if __name__ == "__main__":
    key = jax.random.PRNGKey(0)
    k_emb, k_tgt, k_par = jax.random.split(key, 3)

    N, D = 8, 32  # small shapes: batch=8, feat_dim=32
    embedding = jax.random.normal(k_emb, (N, D), dtype=jnp.float32)
    targets = jax.random.randint(k_tgt, (N,), 0, 3, dtype=jnp.int32)

    # nn.Parameter(98, 1): uniform(-1, 1) then renormed. Deterministically initialized but
    # UNUSED in the forward pass (as in the module).
    kernel_param = jax.random.uniform(k_par, (98, 1), minval=-1.0, maxval=1.0)
    kernel_param = kernel_param / jnp.linalg.norm(kernel_param)

    result = opt_loss(embedding, targets,
                      m_lb=0.3, m_ub=0.7, scale=1.0,
                      lam=100.0, niter=100, thresh=0.1)
    jax.block_until_ready(result[0])
    print("KERNEL_OK")
</pallas_src>

<mosaic_0001>
module attributes {stable_mosaic.version = 11 : i64} {
  func.func @opt_loss_kernel(%arg0: memref<8x32xf32, #tpu.memory_space<vmem>>, %arg1: memref<8x1xi32, #tpu.memory_space<vmem>>, %arg2: memref<1x8xi32, #tpu.memory_space<vmem>>, %arg3: memref<1x1xf32, #tpu.memory_space<vmem>>) attributes {dimension_semantics = [], scalar_prefetch = 0 : i64, scratch_operands = 0 : i64, tpu.core_type = #tpu.core_type<tc>} {
    %c0 = arith.constant 0 : index
    %c0_0 = arith.constant 0 : index
    %0 = vector.load %arg0[%c0, %c0_0] : memref<8x32xf32, #tpu.memory_space<vmem>>, vector<8x32xf32>
    %1 = arith.mulf %0, %0 : vector<8x32xf32>
    %cst = arith.constant dense<0.000000e+00> : vector<8xf32>
    %2 = vector.multi_reduction <add>, %1, %cst [1] : vector<8x32xf32> to vector<8xf32>
    %3 = vector.shape_cast %2 : vector<8xf32> to vector<8x1xf32>
    %4 = math.sqrt %3 : vector<8x1xf32>
    %cst_1 = arith.constant 9.99999996E-13 : f32
    %5 = vector.broadcast %cst_1 : f32 to vector<8x1xf32>
    %6 = arith.maximumf %4, %5 : vector<8x1xf32>
    %7 = vector.broadcast %6 : vector<8x1xf32> to vector<8x32xf32>
    %8 = arith.divf %0, %7 : vector<8x32xf32>
    %cst_2 = arith.constant dense<0.000000e+00> : vector<8x8xf32>
    %9 = tpu.matmul %8, %8, %cst_2 {dimension_numbers = #tpu.dot_dimension_numbers<[1], [1], [0], [0], [0, 0, 1, 0], [], []>} : vector<8x32xf32>, vector<8x32xf32>, vector<8x8xf32> -> vector<8x8xf32>
    %c0_3 = arith.constant 0 : index
    %c0_4 = arith.constant 0 : index
    %10 = vector.load %arg1[%c0_3, %c0_4] : memref<8x1xi32, #tpu.memory_space<vmem>>, vector<8x1xi32>
    %c0_5 = arith.constant 0 : index
    %c0_6 = arith.constant 0 : index
    %11 = vector.load %arg2[%c0_5, %c0_6] : memref<1x8xi32, #tpu.memory_space<vmem>>, vector<1x8xi32>
    %12 = vector.broadcast %10 : vector<8x1xi32> to vector<8x8xi32>
    %13 = vector.broadcast %11 : vector<1x8xi32> to vector<8x8xi32>
    %14 = arith.cmpi eq, %12, %13 : vector<8x8xi32>
    %15 = arith.extui %14 : vector<8x8xi1> to vector<8x8xi32>
    %16 = arith.sitofp %15 : vector<8x8xi32> to vector<8x8xf32>
    %cst_7 = arith.constant 1.000000e+00 : f32
    %17 = vector.broadcast %cst_7 : f32 to vector<8x8xf32>
    %18 = arith.subf %17, %16 : vector<8x8xf32>
    %cst_8 = arith.constant 0.699999988 : f32
    %19 = vector.broadcast %cst_8 : f32 to vector<8x8xf32>
    %20 = arith.cmpf ogt, %9, %19 : vector<8x8xf32>
    %21 = arith.extui %20 : vector<8x8xi1> to vector<8x8xi32>
    %22 = arith.sitofp %21 : vector<8x8xi32> to vector<8x8xf32>
    %23 = arith.addf %22, %9 : vector<8x8xf32>
    %24 = arith.mulf %16, %23 : vector<8x8xf32>
    %cst_9 = arith.constant 3.000000e+01 : f32
    %25 = vector.broadcast %cst_9 : f32 to vector<8x8xf32>
    %26 = arith.mulf %18, %25 : vector<8x8xf32>
    %27 = arith.addf %24, %26 : vector<8x8xf32>
    %28 = vector.shape_cast %27 : vector<8x8xf32> to vector<1x8x8xf32>
    %cst_10 = arith.constant dense<0x7F800000> : vector<1xf32>
    %29 = vector.multi_reduction <minimumf>, %28, %cst_10 [1, 2] : vector<1x8x8xf32> to vector<1xf32>
    %30 = vector.shape_cast %29 : vector<1xf32> to vector<1x1x1xf32>
    %31 = vector.extract %30[0, 0, 0] : f32 from vector<1x1x1xf32>
    %32 = vector.shape_cast %27 : vector<8x8xf32> to vector<1x8x8xf32>
    %cst_11 = arith.constant dense<0xFF800000> : vector<1xf32>
    %33 = vector.multi_reduction <maximumf>, %32, %cst_11 [1, 2] : vector<1x8x8xf32> to vector<1xf32>
    %34 = vector.shape_cast %33 : vector<1xf32> to vector<1x1x1xf32>
    %35 = vector.extract %34[0, 0, 0] : f32 from vector<1x1x1xf32>
    %36 = arith.subf %35, %31 : f32
    %cst_12 = arith.constant 1.000000e+00 : f32
    %37 = arith.divf %cst_12, %36 : f32
    %38 = vector.broadcast %31 : f32 to vector<8x8xf32>
    %39 = arith.subf %27, %38 : vector<8x8xf32>
    %40 = vector.broadcast %37 : f32 to vector<8x8xf32>
    %41 = arith.mulf %39, %40 : vector<8x8xf32>
    %cst_13 = arith.constant 3.000000e-01 : f32
    %42 = vector.broadcast %cst_13 : f32 to vector<8x8xf32>
    %43 = arith.cmpf olt, %9, %42 : vector<8x8xf32>
    %44 = arith.extui %43 : vector<8x8xi1> to vector<8x8xi32>
    %45 = arith.sitofp %44 : vector<8x8xi32> to vector<8x8xf32>
    %cst_14 = arith.constant 1.000000e+00 : f32
    %46 = vector.broadcast %cst_14 : f32 to vector<8x8xf32>
    %47 = arith.addf %45, %46 : vector<8x8xf32>
    %48 = arith.subf %47, %9 : vector<8x8xf32>
    %49 = arith.mulf %18, %48 : vector<8x8xf32>
    %cst_15 = arith.constant 3.000000e+01 : f32
    %50 = vector.broadcast %cst_15 : f32 to vector<8x8xf32>
    %51 = arith.mulf %16, %50 : vector<8x8xf32>
    %52 = arith.addf %49, %51 : vector<8x8xf32>
    %53 = vector.shape_cast %52 : vector<8x8xf32> to vector<1x8x8xf32>
    %cst_16 = arith.constant dense<0x7F800000> : vector<1xf32>
    %54 = vector.multi_reduction <minimumf>, %53, %cst_16 [1, 2] : vector<1x8x8xf32> to vector<1xf32>
    %55 = vector.shape_cast %54 : vector<1xf32> to vector<1x1x1xf32>
    %56 = vector.extract %55[0, 0, 0] : f32 from vector<1x1x1xf32>
    %57 = vector.shape_cast %52 : vector<8x8xf32> to vector<1x8x8xf32>
    %cst_17 = arith.constant dense<0xFF800000> : vector<1xf32>
    %58 = vector.multi_reduction <maximumf>, %57, %cst_17 [1, 2] : vector<1x8x8xf32> to vector<1xf32>
    %59 = vector.shape_cast %58 : vector<1xf32> to vector<1x1x1xf32>
    %60 = vector.extract %59[0, 0, 0] : f32 from vector<1x1x1xf32>
    %61 = arith.subf %60, %56 : f32
    %cst_18 = arith.constant 1.000000e+00 : f32
    %62 = arith.divf %cst_18, %61 : f32
    %63 = vector.broadcast %56 : f32 to vector<8x8xf32>
    %64 = arith.subf %52, %63 : vector<8x8xf32>
    %65 = vector.broadcast %62 : f32 to vector<8x8xf32>
    %66 = arith.mulf %64, %65 : vector<8x8xf32>
    %cst_19 = arith.constant 0.000000e+00 : f32
    %cst_20 = arith.constant 1.000000e+02 : f32
    %67 = arith.subf %cst_19, %cst_20 : f32
    %68 = vector.broadcast %67 : f32 to vector<8x8xf32>
    %69 = arith.mulf %68, %41 : vector<8x8xf32>
    %70 = math.exp %69 : vector<8x8xf32>
    %cst_21 = arith.constant 0.000000e+00 : f32
    %cst_22 = arith.constant 1.000000e+02 : f32
    %71 = arith.subf %cst_21, %cst_22 : f32
    %72 = vector.broadcast %71 : f32 to vector<8x8xf32>
    %73 = arith.mulf %72, %66 : vector<8x8xf32>
    %74 = math.exp %73 : vector<8x8xf32>
    %cst_23 = arith.constant 9.99999997E-7 : f32
    %cst_24 = arith.constant -2.07944155 : f32
    %cst_25 = arith.constant 0.00999999977 : f32
    %cst_26 = arith.constant 1.250000e-01 : f32
    %cst_27 = arith.constant 1.000000e-01 : f32
    %c0_i32 = arith.constant 0 : i32
    %cst_28 = arith.constant 0.000000e+00 : f32
    %cst_29 = arith.constant 0.000000e+00 : f32
    %75:5 = scf.while (%arg4 = %c0_i32, %arg5 = %cst_28, %arg6 = %cst_29, %arg7 = %70, %arg8 = %74) : (i32, f32, f32, vector<8x8xf32>, vector<8x8xf32>) -> (i32, f32, f32, vector<8x8xf32>, vector<8x8xf32>) {
      %c100_i32 = arith.constant 100 : i32
      %106 = arith.cmpi slt, %arg4, %c100_i32 : i32
      %107 = arith.addf %arg5, %arg6 : f32
      %cst_41 = arith.constant 1.500000e+00 : f32
      %108 = arith.cmpf olt, %107, %cst_41 : f32
      %109 = arith.andi %106, %108 : i1
      scf.condition(%109) %arg4, %arg5, %arg6, %arg7, %arg8 : i32, f32, f32, vector<8x8xf32>, vector<8x8xf32>
    } do {
    ^bb0(%arg4: i32, %arg5: f32, %arg6: f32, %arg7: vector<8x8xf32>, %arg8: vector<8x8xf32>):
      %cst_41 = arith.constant dense<0.000000e+00> : vector<8xf32>
      %106 = vector.multi_reduction <add>, %arg7, %cst_41 [1] : vector<8x8xf32> to vector<8xf32>
      %107 = vector.shape_cast %106 : vector<8xf32> to vector<8x1xf32>
      %108 = vector.broadcast %cst_23 : f32 to vector<8x1xf32>
      %109 = arith.addf %107, %108 : vector<8x1xf32>
      %110 = math.log %109 : vector<8x1xf32>
      %111 = vector.broadcast %cst_24 : f32 to vector<8x1xf32>
      %112 = arith.subf %111, %110 : vector<8x1xf32>
      %113 = math.absf %112 : vector<8x1xf32>
      %114 = vector.shape_cast %113 : vector<8x1xf32> to vector<1x8x1xf32>
      %cst_42 = arith.constant dense<0.000000e+00> : vector<1xf32>
      %115 = vector.multi_reduction <add>, %114, %cst_42 [1, 2] : vector<1x8x1xf32> to vector<1xf32>
      %116 = vector.shape_cast %115 : vector<1xf32> to vector<1x1x1xf32>
      %117 = vector.extract %116[0, 0, 0] : f32 from vector<1x1x1xf32>
      %118 = arith.mulf %cst_25, %117 : f32
      %119 = vector.broadcast %cst_23 : f32 to vector<8x1xf32>
      %120 = arith.addf %107, %119 : vector<8x1xf32>
      %121 = vector.broadcast %cst_26 : f32 to vector<8x1xf32>
      %122 = arith.divf %121, %120 : vector<8x1xf32>
      %123 = vector.broadcast %122 : vector<8x1xf32> to vector<8x8xf32>
      %124 = arith.mulf %arg7, %123 : vector<8x8xf32>
      %cst_43 = arith.constant dense<0.000000e+00> : vector<8xf32>
      %125 = vector.multi_reduction <add>, %124, %cst_43 [0] : vector<8x8xf32> to vector<8xf32>
      %126 = vector.shape_cast %125 : vector<8xf32> to vector<1x8xf32>
      %127 = vector.broadcast %cst_23 : f32 to vector<1x8xf32>
      %128 = arith.addf %126, %127 : vector<1x8xf32>
      %129 = vector.broadcast %cst_26 : f32 to vector<1x8xf32>
      %130 = arith.divf %129, %128 : vector<1x8xf32>
      %131 = vector.broadcast %130 : vector<1x8xf32> to vector<8x8xf32>
      %132 = arith.mulf %124, %131 : vector<8x8xf32>
      %133 = vector.broadcast %arg5 : f32 to vector<8x8xf32>
      %134 = arith.mulf %133, %arg7 : vector<8x8xf32>
      %cst_44 = arith.constant 1.000000e+00 : f32
      %135 = arith.subf %cst_44, %arg5 : f32
      %136 = vector.broadcast %135 : f32 to vector<8x8xf32>
      %137 = arith.mulf %136, %132 : vector<8x8xf32>
      %138 = arith.addf %134, %137 : vector<8x8xf32>
      %139 = arith.cmpf olt, %118, %cst_27 : f32
      %140 = arith.extui %139 : i1 to i32
      %141 = arith.sitofp %140 : i32 to f32
      %142 = arith.maximumf %arg5, %141 : f32
      %cst_45 = arith.constant dense<0.000000e+00> : vector<8xf32>
      %143 = vector.multi_reduction <add>, %arg8, %cst_45 [1] : vector<8x8xf32> to vector<8xf32>
      %144 = vector.shape_cast %143 : vector<8xf32> to vector<8x1xf32>
      %145 = vector.broadcast %cst_23 : f32 to vector<8x1xf32>
      %146 = arith.addf %144, %145 : vector<8x1xf32>
      %147 = math.log %146 : vector<8x1xf32>
      %148 = vector.broadcast %cst_24 : f32 to vector<8x1xf32>
      %149 = arith.subf %148, %147 : vector<8x1xf32>
      %150 = math.absf %149 : vector<8x1xf32>
      %151 = vector.shape_cast %150 : vector<8x1xf32> to vector<1x8x1xf32>
      %cst_46 = arith.constant dense<0.000000e+00> : vector<1xf32>
      %152 = vector.multi_reduction <add>, %151, %cst_46 [1, 2] : vector<1x8x1xf32> to vector<1xf32>
      %153 = vector.shape_cast %152 : vector<1xf32> to vector<1x1x1xf32>
      %154 = vector.extract %153[0, 0, 0] : f32 from vector<1x1x1xf32>
      %155 = arith.mulf %cst_25, %154 : f32
      %156 = vector.broadcast %cst_23 : f32 to vector<8x1xf32>
      %157 = arith.addf %144, %156 : vector<8x1xf32>
      %158 = vector.broadcast %cst_26 : f32 to vector<8x1xf32>
      %159 = arith.divf %158, %157 : vector<8x1xf32>
      %160 = vector.broadcast %159 : vector<8x1xf32> to vector<8x8xf32>
      %161 = arith.mulf %arg8, %160 : vector<8x8xf32>
      %cst_47 = arith.constant dense<0.000000e+00> : vector<8xf32>
      %162 = vector.multi_reduction <add>, %161, %cst_47 [0] : vector<8x8xf32> to vector<8xf32>
      %163 = vector.shape_cast %162 : vector<8xf32> to vector<1x8xf32>
      %164 = vector.broadcast %cst_23 : f32 to vector<1x8xf32>
      %165 = arith.addf %163, %164 : vector<1x8xf32>
      %166 = vector.broadcast %cst_26 : f32 to vector<1x8xf32>
      %167 = arith.divf %166, %165 : vector<1x8xf32>
      %168 = vector.broadcast %167 : vector<1x8xf32> to vector<8x8xf32>
      %169 = arith.mulf %161, %168 : vector<8x8xf32>
      %170 = vector.broadcast %arg6 : f32 to vector<8x8xf32>
      %171 = arith.mulf %170, %arg8 : vector<8x8xf32>
      %cst_48 = arith.constant 1.000000e+00 : f32
      %172 = arith.subf %cst_48, %arg6 : f32
      %173 = vector.broadcast %172 : f32 to vector<8x8xf32>
      %174 = arith.mulf %173, %169 : vector<8x8xf32>
      %175 = arith.addf %171, %174 : vector<8x8xf32>
      %176 = arith.cmpf olt, %155, %cst_27 : f32
      %177 = arith.extui %176 : i1 to i32
      %178 = arith.sitofp %177 : i32 to f32
      %179 = arith.maximumf %arg6, %178 : f32
      %c1_i32 = arith.constant 1 : i32
      %180 = arith.addi %arg4, %c1_i32 : i32
      scf.yield %180, %142, %179, %138, %175 : i32, f32, f32, vector<8x8xf32>, vector<8x8xf32>
    }
    %cst_30 = arith.constant 0.699999988 : f32
    %76 = vector.broadcast %cst_30 : f32 to vector<8x8xf32>
    %77 = arith.subf %76, %9 : vector<8x8xf32>
    %cst_31 = arith.constant 0.000000e+00 : f32
    %78 = vector.broadcast %cst_31 : f32 to vector<8x8xf32>
    %79 = arith.maximumf %77, %78 : vector<8x8xf32>
    %80 = arith.mulf %16, %79 : vector<8x8xf32>
    %cst_32 = arith.constant -1.000000e+07 : f32
    %81 = vector.broadcast %cst_32 : f32 to vector<8x8xf32>
    %82 = arith.mulf %18, %81 : vector<8x8xf32>
    %83 = arith.addf %80, %82 : vector<8x8xf32>
    %cst_33 = arith.constant 3.000000e-01 : f32
    %84 = vector.broadcast %cst_33 : f32 to vector<8x8xf32>
    %85 = arith.subf %9, %84 : vector<8x8xf32>
    %cst_34 = arith.constant 0.000000e+00 : f32
    %86 = vector.broadcast %cst_34 : f32 to vector<8x8xf32>
    %87 = arith.maximumf %85, %86 : vector<8x8xf32>
    %88 = arith.mulf %18, %87 : vector<8x8xf32>
    %cst_35 = arith.constant -1.000000e+07 : f32
    %89 = vector.broadcast %cst_35 : f32 to vector<8x8xf32>
    %90 = arith.mulf %16, %89 : vector<8x8xf32>
    %91 = arith.addf %88, %90 : vector<8x8xf32>
    %92 = arith.mulf %75#3, %83 : vector<8x8xf32>
    %93 = vector.shape_cast %92 : vector<8x8xf32> to vector<1x8x8xf32>
    %cst_36 = arith.constant dense<0.000000e+00> : vector<1xf32>
    %94 = vector.multi_reduction <add>, %93, %cst_36 [1, 2] : vector<1x8x8xf32> to vector<1xf32>
    %95 = vector.shape_cast %94 : vector<1xf32> to vector<1x1x1xf32>
    %96 = vector.extract %95[0, 0, 0] : f32 from vector<1x1x1xf32>
    %97 = arith.mulf %75#4, %91 : vector<8x8xf32>
    %98 = vector.shape_cast %97 : vector<8x8xf32> to vector<1x8x8xf32>
    %cst_37 = arith.constant dense<0.000000e+00> : vector<1xf32>
    %99 = vector.multi_reduction <add>, %98, %cst_37 [1, 2] : vector<1x8x8xf32> to vector<1xf32>
    %100 = vector.shape_cast %99 : vector<1xf32> to vector<1x1x1xf32>
    %101 = vector.extract %100[0, 0, 0] : f32 from vector<1x1x1xf32>
    %102 = arith.addf %96, %101 : f32
    %cst_38 = arith.constant 1.000000e+00 : f32
    %103 = arith.mulf %102, %cst_38 : f32
    %104 = vector.broadcast %103 : f32 to vector<1x1xf32>
    %c0_39 = arith.constant 0 : index
    %c0_40 = arith.constant 0 : index
    %105 = vector.load %arg3[%c0_39, %c0_40] : memref<1x1xf32, #tpu.memory_space<vmem>>, vector<1x1xf32>
    tpu.vector_store %arg3[%c0_39, %c0_40], %104 {strides = array<i32>} : memref<1x1xf32, #tpu.memory_space<vmem>>, vector<1x1xf32>,
    return
  }
}

</mosaic_0001>

<llo_original>
// kernel: tpu_custom_call.1
$region0: #{tpu_custom_call.1}
  #allocation0 [shape = 'u32[]', space=smem, size = 0x4, offset = 0x4, fixed_abs, tag = 'smem constant byte address 0x4 - core index']
  #allocation1 [shape = 'u32[144,128]{1,0:T(1,128)}', space=vmem, size = 0x12000, scoped, tag = 'internal scratch']
  %s0 = inlined_call_operand.vmem [shape: f32[8,32], index: 0, kind: input, shape index: {}]
  %s1 = inlined_call_operand.vmem [shape: s32[8,1], index: 1, kind: input, shape index: {}]
  %s2 = inlined_call_operand.vmem [shape: s32[1,8], index: 2, kind: input, shape index: {}]
  %s3 = inlined_call_operand.hbm [shape: f32[1,1], index: 3, kind: output, shape index: {}]
  %s4 = sld [smem:[#allocation0]]
  $region29: #{tpu_custom_call.1} parent=0
    _
  %s6 = ssub.s32 1, %s4
  %s7 = scalar_select 0, %s6, %s4
  $region1: #{tpu_custom_call.1} parent=0
    #allocation2 [shape = 'u8[512]{0}', space=vmem, size = 0x400, scoped, tag = 'output window, operand 0, single buffered']
    #allocation3 [shape = 's32[1]{0}', space=sflag, size = 0x4, scoped, tag = 'scoped memory for tpu_custom_call.1']
    %8 = vsyncpa [#allocation3], 0
    // Predicated region
    $region2: #{tpu_custom_call.1} parent=1 // pred_check
      _
    $region3: #{tpu_custom_call.1} parent=1 // pred_check_branch
      %10 = sbr.rel (0) target = $region5
    $region4: #{tpu_custom_call.1} parent=1 // pred_region
      _
    $region5: #{tpu_custom_call.1} parent=1 // pred_fallthru
      _
    // Predicated region
    $region6: #{tpu_custom_call.1} parent=1 // pred_check
      _
    $region7: #{tpu_custom_call.1} parent=1 // pred_check_branch
      %12 = sbr.rel (0) target = $region9
    $region8: #{tpu_custom_call.1} parent=1 // pred_region
      _
    $region9: #{tpu_custom_call.1} parent=1 // pred_fallthru
      _
    // Predicated region
    $region10: #{tpu_custom_call.1} parent=1 // pred_check
      _
    $region11: #{tpu_custom_call.1} parent=1 // pred_check_branch
      %14 = sbr.rel (0) target = $region13
    $region12: #{tpu_custom_call.1} parent=1 // pred_region
      _
    $region13: #{tpu_custom_call.1} parent=1 // pred_fallthru
      _
    %v15 = vld [vmem:[%s0] sm:$0xff]
    %v16 = vmul.f32 %v15, %v15
    %vm17 = vcmask 261120
    %v18 = vsel %vm17, %v16, 0.0
    %19 = vadd.xlane.f32.xlu0 %v18
    %v20 = vpop.xlane.xlu0 %19
    %v21 = vrsqrt.pop %v20
    %v22 = vmul.f32 %v20, %v21
    %vm23 = vcmp.eq.f32.partialorder %v20, inf
    %v24 = vsel %vm23, %v20, %v22
    %vm25 = vcmp.eq.f32.partialorder %v20, 0.0
    %v26 = vand.u32 %v20, 2147483648
    %v27 = vsel %vm25, %v26, %v24
    %v28 = vmax.f32 %v27, 1e-12
    %v29 = vrcp.pop %v28
    %v30 = vmul.f32 %v15, %v29
    %v32 = vsel %vm17, %v30, 0
    %34 = vmatprep.subr.mxu0 0.0
    %35 = vmatpush1.xpose.msra.mxu0 %v32
    %36 = vmatprep.subr.mxu0 0.0
    %37 = vmatpush1.xpose.msra.mxu0 0.0
    %38 = vmatprep.subr.mxu0 0.0
    %39 = vmatpush1.xpose.msra.mxu0 0.0
    %40 = vmatprep.subr.mxu0 0.0
    %41 = vmatpush1.xpose.msra.mxu0 0.0
    %42 = vmatprep.subr.mxu0 0.0
    %43 = vmatpush1.xpose.msra.mxu0 0.0
    %44 = vmatprep.subr.mxu0 0.0
    %45 = vmatpush1.xpose.msra.mxu0 0.0
    %46 = vmatprep.subr.mxu0 0.0
    %47 = vmatpush1.xpose.msra.mxu0 0.0
    %48 = vmatprep.subr.mxu0 0.0
    %49 = vmatpush1.xpose.msra.mxu0 0.0
    %50 = vmatprep.subr.mxu0 0.0
    %51 = vmatpush1.xpose.msra.mxu0 0.0
    %52 = vmatprep.subr.mxu0 0.0
    %53 = vmatpush1.xpose.msra.mxu0 0.0
    %54 = vmatprep.subr.mxu0 0.0
    %55 = vmatpush1.xpose.msra.mxu0 0.0
    %56 = vmatprep.subr.mxu0 0.0
    %57 = vmatpush1.xpose.msra.mxu0 0.0
    %58 = vmatprep.subr.mxu0 0.0
    %59 = vmatpush1.xpose.msra.mxu0 0.0
    %60 = vmatprep.subr.mxu0 0.0
    %61 = vmatpush1.xpose.msra.mxu0 0.0
    %62 = vmatprep.subr.mxu0 0.0
    %63 = vmatpush1.xpose.msra.mxu0 0.0
    %64 = vmatprep.subr.mxu0 0.0
    %65 = vmatpush1.xpose.msra.mxu0 0.0
    %66 = vmatprep.subr.mxu0 0.0
    %67 = vmatpush1.xpose.msra.mxu0 0.0
    %68 = vmatprep.subr.mxu0 0.0
    %69 = vmatpush1.xpose.msra.mxu0 0.0
    %70 = vmatprep.subr.mxu0 0.0
    %71 = vmatpush1.xpose.msra.mxu0 0.0
    %72 = vmatprep.subr.mxu0 0.0
    %73 = vmatpush1.xpose.msra.mxu0 0.0
    %74 = vmatprep.subr.mxu0 0.0
    %75 = vmatpush1.xpose.msra.mxu0 0.0
    %76 = vmatprep.subr.mxu0 0.0
    %77 = vmatpush1.xpose.msra.mxu0 0.0
    %78 = vmatprep.subr.mxu0 0.0
    %79 = vmatpush1.xpose.msra.mxu0 0.0
    %80 = vmatprep.subr.mxu0 0.0
    %81 = vmatpush1.xpose.msra.mxu0 0.0
    %82 = vmatprep.subr.mxu0 0.0
    %83 = vmatpush1.xpose.msra.mxu0 0.0
    %84 = vmatprep.subr.mxu0 0.0
    %85 = vmatpush1.xpose.msra.mxu0 0.0
    %86 = vmatprep.subr.mxu0 0.0
    %87 = vmatpush1.xpose.msra.mxu0 0.0
    %88 = vmatprep.subr.mxu0 0.0
    %89 = vmatpush1.xpose.msra.mxu0 0.0
    %90 = vmatprep.subr.mxu0 0.0
    %91 = vmatpush1.xpose.msra.mxu0 0.0
    %92 = vmatprep.subr.mxu0 0.0
    %93 = vmatpush1.xpose.msra.mxu0 0.0
    %94 = vmatprep.subr.mxu0 0.0
    %95 = vmatpush1.xpose.msra.mxu0 0.0
    %96 = vmatprep.subr.mxu0 0.0
    %97 = vmatpush1.xpose.msra.mxu0 0.0
    %98 = vmatprep.mubr.f32.mxu0 0.0
    %99 = vmatmul.mubr.f32.gmra.mrb[0].mxu0 %v32
    %v100 = vpop.f32.mrb[0].mxu0
    %v101 = vadd.f32 0.0, %v100
    %v102 = vpop.f32.mrb[0].mxu0
    %103 = vdwg.mxu0
    %v104 = vld [vmem:[%s1] sm:$0xff]
    %v105 = vld [vmem:[%s2] sm:$0x1]
    %106 = vset.pattern.permute.xlu0 0
    %107 = vperm.xlu0 %106, %v104
    %v108 = vpop.permute.xlu0 %107
    %v109 = vlaneseq
    %v110 = vshrl.u32 %v109, 7
    %v111 = vsub.s32 0, %v110
    %v112 = vrot.slane %v105, %v111
    %vm113 = vcmp.eq.s32.totalorder %v108, %v112
    %v114 = vsel %vm113, 1, 0
    %v115 = vcvt.s32.f32 %v114
    %v116 = vsub.f32 1.0, %v115
    %vm117 = vcmp.gt.f32.partialorder %v101, 0.7
    %v118 = vsel %vm117, 1, 0
    %v119 = vcvt.s32.f32 %v118
    %v120 = vadd.f32 %v119, %v101
    %v121 = vmul.f32 %v115, %v120
    %v122 = vmul.f32 %v116, 30.0
    %v123 = vadd.f32 %v121, %v122
    %vm124 = vcmask 64512
    %v125 = vsel %vm124, %v123, inf
    %126 = vmin.xlane.f32.xlu0 %v125
    %v127 = vpop.xlane.xlu0 %126
    %v128 = vrot.slane %v127, 4
    %v129 = vmin.f32 %v127, %v128
    %v130 = vrot.slane %v129, 2
    %v131 = vmin.f32 %v129, %v130
    %v132 = vrot.slane %v131, 1
    %v133 = vmin.f32 %v131, %v132
    %s134 = vtos %v133
    %v135 = vsel %vm124, %v123, -inf
    %136 = vmax.xlane.f32.xlu0 %v135
    %v137 = vpop.xlane.xlu0 %136
    %v138 = vrot.slane %v137, 4
    %v139 = vmax.f32 %v137, %v138
    %v140 = vrot.slane %v139, 2
    %v141 = vmax.f32 %v139, %v140
    %v142 = vrot.slane %v141, 1
    %v143 = vmax.f32 %v141, %v142
    %s144 = vtos %v143
    %s145 = ssub.f32 %s144, %s134
    %v146 = vstv %s145
    %v147 = vrcp.pop %v146
    %s148 = vtos %v147
    %v149 = vstv %s134
    %v150 = vsub.f32 %v123, %v149
    %v151 = vstv %s148
    %v152 = vmul.f32 %v150, %v151
    %vm153 = vcmp.lt.f32.partialorder %v101, 0.3
    %v154 = vsel %vm153, 1, 0
    %v155 = vcvt.s32.f32 %v154
    %v156 = vadd.f32 %v155, 1.0
    %v157 = vsub.f32 %v156, %v101
    %v158 = vmul.f32 %v116, %v157
    %v159 = vmul.f32 %v115, 30.0
    %v160 = vadd.f32 %v158, %v159
    %v161 = vsel %vm124, %v160, inf
    %162 = vmin.xlane.f32.xlu0 %v161
    %v163 = vpop.xlane.xlu0 %162
    %v164 = vrot.slane %v163, 4
    %v165 = vmin.f32 %v163, %v164
    %v166 = vrot.slane %v165, 2
    %v167 = vmin.f32 %v165, %v166
    %v168 = vrot.slane %v167, 1
    %v169 = vmin.f32 %v167, %v168
    %s170 = vtos %v169
    %v171 = vsel %vm124, %v160, -inf
    %172 = vmax.xlane.f32.xlu0 %v171
    %v173 = vpop.xlane.xlu0 %172
    %v174 = vrot.slane %v173, 4
    %v175 = vmax.f32 %v173, %v174
    %v176 = vrot.slane %v175, 2
    %v177 = vmax.f32 %v175, %v176
    %v178 = vrot.slane %v177, 1
    %v179 = vmax.f32 %v177, %v178
    %s180 = vtos %v179
    %s181 = ssub.f32 %s180, %s170
    %v182 = vstv %s181
    %v183 = vrcp.pop %v182
    %s184 = vtos %v183
    %v185 = vstv %s170
    %v186 = vsub.f32 %v160, %v185
    %v187 = vstv %s184
    %v188 = vmul.f32 %v186, %v187
    %v189 = vmul.f32 %v152, -100.0
    %v190 = vmul.f32 %v189, 1.442695
    %v191 = vpow.pop %v190
    %v192 = vmul.f32 %v188, -100.0
    %v193 = vmul.f32 %v192, 1.442695
    %v194 = vpow.pop %v193
    // While loop
    $region14: #{tpu_custom_call.1} parent=1 // loop_pre_header
      _
    $region15: #{tpu_custom_call.1} parent=1 // loop_header
      %s196 = sphi 0, %s295
      %s197 = sphi 0.0, %s251
      %s198 = sphi 0.0, %s294
      %v199 = vphi %v191, %v247
      %v200 = vphi %v194, %v290
      %p201 = scmp.lt.s32.totalorder %s196, 100
      %s202 = sadd.f32 %s197, %s198
      %p203 = scmp.lt.f32.partialorder %s202, 1.5
      %p204 = pnand %p201, %p203
      %p205 = pneg %p204
    $region16: #{tpu_custom_call.1} parent=1 // loop_header_branch
      %207 = sbr.rel (%p204) target = $region20
    $region17: #{tpu_custom_call.1} parent=1 // loop_body
      %v208 = vsel %vm124, %v199, 0.0
      %209 = vadd.xlane.f32.xlu0 %v208
      %v210 = vpop.xlane.xlu0 %209
      %v211 = vadd.f32 %v210, 1e-06
      %v212 = vlog2.pop %v211
      %v213 = vmul.f32 %v212, 0.6931472
      %v214 = vsub.f32 -2.0794415, %v213
      %v215 = vand.u32 2147483647, %v214
      %vm216 = vcmask 7168
      %v217 = vsel %vm216, %v215, 0.0
      %218 = vadd.xlane.f32.xlu0 %v217
      %v219 = vpop.xlane.xlu0 %218
      %v220 = vrot.slane %v219, 4
      %v221 = vadd.f32 %v219, %v220
      %v222 = vrot.slane %v221, 2
      %v223 = vadd.f32 %v221, %v222
      %v224 = vrot.slane %v223, 1
      %v225 = vadd.f32 %v223, %v224
      %s226 = vtos %v225
      %s227 = smul.f32 %s226, 0.01
      %v228 = vrcp.pop %v211
      %v229 = vmul.f32 0.125, %v228
      %v230 = vmul.f32 %v199, %v229
      %v231 = vsel %vm124, %v230, 0.0
      %v232 = vrot.slane %v231, 4
      %v233 = vadd.f32 %v231, %v232
      %v234 = vrot.slane %v233, 2
      %v235 = vadd.f32 %v233, %v234
      %v236 = vrot.slane %v235, 1
      %v237 = vadd.f32 %v235, %v236
      %v238 = vadd.f32 %v237, 1e-06
      %v239 = vrcp.pop %v238
      %v240 = vmul.f32 0.125, %v239
      %v241 = vmul.f32 %v230, %v240
      %v242 = vstv %s197
      %v243 = vmul.f32 %v242, %v199
      %s244 = ssub.f32 1.0, %s197
      %v245 = vstv %s244
      %v246 = vmul.f32 %v245, %v241
      %v247 = vadd.f32 %v243, %v246
      %p248 = scmp.lt.f32.partialorder %s227, 0.1
      %s249 = scalar_select %p248, 1, 0
      %s250 = scvt.s32.f32 %s249
      %s251 = smax.f32 %s197, %s250
      %v252 = vsel %vm124, %v200, 0.0
      %253 = vadd.xlane.f32.xlu0 %v252
      %v254 = vpop.xlane.xlu0 %253
      %v255 = vadd.f32 %v254, 1e-06
      %v256 = vlog2.pop %v255
      %v257 = vmul.f32 %v256, 0.6931472
      %v258 = vsub.f32 -2.0794415, %v257
      %v259 = vand.u32 2147483647, %v258
      %v260 = vsel %vm216, %v259, 0.0
      %261 = vadd.xlane.f32.xlu0 %v260
      %v262 = vpop.xlane.xlu0 %261
      %v263 = vrot.slane %v262, 4
      %v264 = vadd.f32 %v262, %v263
      %v265 = vrot.slane %v264, 2
      %v266 = vadd.f32 %v264, %v265
      %v267 = vrot.slane %v266, 1
      %v268 = vadd.f32 %v266, %v267
      %s269 = vtos %v268
      %s270 = smul.f32 %s269, 0.01
      %v271 = vrcp.pop %v255
      %v272 = vmul.f32 0.125, %v271
      %v273 = vmul.f32 %v200, %v272
      %v274 = vsel %vm124, %v273, 0.0
      %v275 = vrot.slane %v274, 4
      %v276 = vadd.f32 %v274, %v275
      %v277 = vrot.slane %v276, 2
      %v278 = vadd.f32 %v276, %v277
      %v279 = vrot.slane %v278, 1
      %v280 = vadd.f32 %v278, %v279
      %v281 = vadd.f32 %v280, 1e-06
      %v282 = vrcp.pop %v281
      %v283 = vmul.f32 0.125, %v282
      %v284 = vmul.f32 %v273, %v283
      %v285 = vstv %s198
      %v286 = vmul.f32 %v285, %v200
      %s287 = ssub.f32 1.0, %s198
      %v288 = vstv %s287
      %v289 = vmul.f32 %v288, %v284
      %v290 = vadd.f32 %v286, %v289
      %p291 = scmp.lt.f32.partialorder %s270, 0.1
      %s292 = scalar_select %p291, 1, 0
      %s293 = scvt.s32.f32 %s292
      %s294 = smax.f32 %s198, %s293
      %s295 = sadd.s32 %s196, 1
    $region18: #{tpu_custom_call.1} parent=1 // loop_footer
      _
    $region19: #{tpu_custom_call.1} parent=1 // loop_footer_branch
      %195 = sbr.rel target = $region15
    $region20: #{tpu_custom_call.1} parent=1 // loop_exit
      _
    %v296 = vsub.f32 0.7, %v101
    %v297 = vmax.f32 %v296, 0.0
    %v298 = vmul.f32 %v115, %v297
    %v299 = vmul.f32 %v116, -10000000.0
    %v300 = vadd.f32 %v298, %v299
    %v301 = vsub.f32 %v101, 0.3
    %v302 = vmax.f32 %v301, 0.0
    %v303 = vmul.f32 %v116, %v302
    %v304 = vmul.f32 %v115, -10000000.0
    %v305 = vadd.f32 %v303, %v304
    %v306 = vmul.f32 %v199, %v300
    %v307 = vsel %vm124, %v306, 0.0
    %308 = vadd.xlane.f32.xlu0 %v307
    %v309 = vpop.xlane.xlu0 %308
    %v310 = vrot.slane %v309, 4
    %v311 = vadd.f32 %v309, %v310
    %v312 = vrot.slane %v311, 2
    %v313 = vadd.f32 %v311, %v312
    %v314 = vrot.slane %v313, 1
    %v315 = vadd.f32 %v313, %v314
    %s316 = vtos %v315
    %v317 = vmul.f32 %v200, %v305
    %v318 = vsel %vm124, %v317, 0.0
    %319 = vadd.xlane.f32.xlu0 %v318
    %v320 = vpop.xlane.xlu0 %319
    %v321 = vrot.slane %v320, 4
    %v322 = vadd.f32 %v320, %v321
    %v323 = vrot.slane %v322, 2
    %v324 = vadd.f32 %v322, %v323
    %v325 = vrot.slane %v324, 1
    %v326 = vadd.f32 %v324, %v325
    %s327 = vtos %v326
    %s328 = sadd.f32 %s316, %s327
    %v329 = vstv %s328
    %vm330 = vcmask 0
    %331 = vst.msk [vmem:[#allocation2] sm:$0x1] %vm330, %v329
    // Predicated region
    $region21: #{tpu_custom_call.1} parent=1 // pred_check
      _
    $region22: #{tpu_custom_call.1} parent=1 // pred_check_branch
      %333 = sbr.rel (0) target = $region24
    $region23: #{tpu_custom_call.1} parent=1 // pred_region
      %s335 = ssub.s32 16, 16
      %336 = vsyncadd [#allocation3], %s335
      %s338 = sshll.u32 [#allocation2], 4
      %s339 = int_to_ptr.vmem [resolvable:$true] %s338
      %341 = dma.vmem_to_hbm [thread:$0]  %s339, 16, %s3, [#allocation3]
    $region24: #{tpu_custom_call.1} parent=1 // pred_fallthru
      _
    // Predicated region
    $region25: #{tpu_custom_call.1} parent=1 // pred_check
      _
    $region26: #{tpu_custom_call.1} parent=1 // pred_check_branch
      %343 = sbr.rel (0) target = $region28
    $region27: #{tpu_custom_call.1} parent=1 // pred_region
      %344 = dma.done [#allocation3], 16
    $region28: #{tpu_custom_call.1} parent=1 // pred_fallthru
      _
    %345 = vsyncpa [#allocation3], 1

</llo_original>
